<compile_context>
chip_gen: v7x
topology: tpu7x:2x2x1
jax: 0.10.0
libtpu: 0.0.40
codegen_flags: <defaults>
</compile_context>

<pallas_src>
import jax
import jax.numpy as jnp
from jax.experimental import pallas as pl
from jax.experimental.pallas import tpu as pltpu


# --------------------------------------------------------------------------
# Hardware-aware helpers (perf-only; safe fallbacks everywhere).
# --------------------------------------------------------------------------
def _vmem_capacity_bytes():
    try:
        return int(pltpu.get_tpu_info().vmem_capacity_bytes)
    except Exception:
        pass
    try:
        kind = jax.devices()[0].device_kind.lower().replace(" ", "")
        if "v7" in kind or "tpu7" in kind:
            return 64 * 1024 * 1024       # v7x: 64 MiB per TensorCore
    except Exception:
        pass
    return 128 * 1024 * 1024              # v5e / v6e: 128 MiB


def _num_tensorcores_per_chip():
    try:
        kind = jax.devices()[0].device_kind.lower().replace(" ", "")
        if "v7" in kind or "tpu7" in kind:
            return 2
    except Exception:
        pass
    return 1


def _step_vmem_bytes(bt, C, Czw, L, in_item=4, out_item=4):
    """Per-grid-step VMEM footprint estimate (pipeline buffers + live values)."""
    # Pallas double-buffers every input/output block by default.
    io_in = 2 * bt * (C * Czw + C * L) * in_item
    io_out = 2 * bt * Czw * L * out_item
    # Grid-invariant weights/biases (also double-buffered by default).
    weights = 2 * (2 * Czw * Czw + 2 * Czw) * 4
    # Live in-kernel intermediates: corr (f32) stays resident across the CA
    # matvecs, plus the scaled result before the store (~2x corr).
    live = 2 * bt * Czw * L * 4
    return io_in + io_out + weights + live


def _choose_batch_tile(B, C, Czw, L, budget_bytes, prefer_even_grid=False):
    """Largest divisor of B whose step footprint fits the budget.

    If `prefer_even_grid` (2-TC chips, e.g. v7x), prefer a tile that yields an
    even number of grid steps so the "parallel" axis can be sharded across
    both TensorCores.
    """
    divisors = sorted((d for d in range(1, B + 1) if B % d == 0), reverse=True)
    fitting = [d for d in divisors
               if _step_vmem_bytes(d, C, Czw, L) <= budget_bytes] or [1]
    if prefer_even_grid:
        even = [d for d in fitting if (B // d) % 2 == 0]
        if even:
            return even[0]
    return fitting[0]


# --------------------------------------------------------------------------
# Fused GroupPW forward.
# --------------------------------------------------------------------------
def group_pw(z, x, w1, b1, w2, b2, *, batch_tile=None,
             compute_dtype=jnp.float32, out_dtype=jnp.float32):
    """GroupPW forward. z: (B,C,Hz,Wz), x: (B,C,Hx,Wx) -> (B, Hz*Wz, Hx, Wx).

    compute_dtype: dtype of the correlation-matmul operands (bf16 on v6e/v7x
    for MXU-native throughput; accumulation is always f32).
    """
    B, C, Hz, Wz = z.shape
    Bx, Cx, Hx, Wx = x.shape
    assert (B, C) == (Bx, Cx)
    Czw = Hz * Wz                  # == num_channel of the CA module
    L = Hx * Wx

    cap = _vmem_capacity_bytes()
    prefer_even = (_num_tensorcores_per_chip() >= 2) and (B >= 2)
    if batch_tile is None:
        Bt = _choose_batch_tile(B, C, Czw, L, int(0.6 * cap), prefer_even)
    else:
        Bt = batch_tile
    assert B % Bt == 0
    G = B // Bt                    # grid steps

    # Glue reshapes only -- NO transpose of z (kernel contracts on C directly).
    z3 = z.reshape(B, C, Czw)      # (B, C, Czw)
    x3 = x.reshape(B, C, L)        # (B, C, L)
    w1t = jnp.transpose(w1)        # (Czw, Czw) -- tiny, done once
    w2t = jnp.transpose(w2)
    b1r = b1.reshape(1, Czw)
    b2r = b2.reshape(1, Czw)

    # Explicit scoped-VMEM limit: generous headroom but never above ~75% of
    # physical capacity (64 MiB on v7x, 128 MiB on v5e/v6e).
    vmem_limit = int(min(0.75 * cap,
                         max(8 * 1024 * 1024,
                             1.5 * _step_vmem_bytes(Bt, C, Czw, L))))

    cost = pl.CostEstimate(
        flops=2 * B * Czw * C * L + 4 * B * Czw * Czw,
        transcendentals=B * Czw,                         # sigmoid
        bytes_accessed=4 * (z3.size + x3.size + 2 * Czw * Czw + 2 * Czw)
                       + jnp.dtype(out_dtype).itemsize * B * Czw * L,
    )

    def kernel(z_ref, x_ref, w1t_ref, b1_ref, w2t_ref, b2_ref, out_ref):
        # z_ref  : (Bt, C, Czw)   template feature, NOT pre-transposed
        # x_ref  : (Bt, C, L)     search feature, flattened spatially
        # w1t/w2t: (Czw, Czw)     CA 1x1 conv weights, pre-transposed (W.T)
        # b1/b2  : (1, Czw)
        # out_ref: (Bt, Czw, L)   written directly; wrapper reshape is metadata
        zt = z_ref[...].astype(compute_dtype)
        xt = x_ref[...].astype(compute_dtype)

        # pixel-wise correlation: contract on C (dim 1 of both operands).
        corr = jnp.einsum('bck,bcl->bkl', zt, xt,
                          preferred_element_type=jnp.float32)   # (Bt, Czw, L)

        # CAModule: adaptive avg pool -> fc1 -> relu -> fc2 -> sigmoid.
        # Pooled activations kept as (Bt, Czw) rows so both matvecs have N=Czw.
        pool = jnp.mean(corr, axis=-1)                           # (Bt, Czw)
        h = jnp.dot(pool, w1t_ref[...],
                    preferred_element_type=jnp.float32) + b1_ref[...]
        h = jnp.maximum(h, 0.0)                                  # ReLU
        a = jnp.dot(h, w2t_ref[...],
                    preferred_element_type=jnp.float32) + b2_ref[...]
        a = jax.nn.sigmoid(a)                                    # (Bt, Czw)

        # Channel-wise re-scaling, stored straight to the output block.
        out_ref[...] = (corr * a[:, :, None]).astype(out_ref.dtype)

    out = pl.pallas_call(
        kernel,
        out_shape=jax.ShapeDtypeStruct((B, Czw, L), out_dtype),
        grid_spec=pltpu.PrefetchScalarGridSpec(
            num_scalar_prefetch=0,
            grid=(G,),
            in_specs=[
                pl.BlockSpec((Bt, C, Czw), lambda g: (g, 0, 0)),   # z (per batch group)
                pl.BlockSpec((Bt, C, L), lambda g: (g, 0, 0)),     # x (per batch group)
                pl.BlockSpec((Czw, Czw), lambda g: (0, 0)),        # w1.T (grid-invariant)
                pl.BlockSpec((1, Czw), lambda g: (0, 0)),          # b1
                pl.BlockSpec((Czw, Czw), lambda g: (0, 0)),        # w2.T
                pl.BlockSpec((1, Czw), lambda g: (0, 0)),          # b2
            ],
            out_specs=pl.BlockSpec((Bt, Czw, L), lambda g: (g, 0, 0)),
        ),
        compiler_params=pltpu.CompilerParams(
            dimension_semantics=("parallel",),
            vmem_limit_bytes=vmem_limit,
        ),
        cost_estimate=cost,
    )(z3, x3, w1t, b1r, w2t, b2r)

    # Pure metadata reshape: (B, Czw, L) -> (B, Czw, Hx, Wx). No extra HBM pass.
    return out.reshape(B, Czw, Hx, Wx)


# --------------------------------------------------------------------------
# Pure-JAX reference mirroring the PyTorch module.
# --------------------------------------------------------------------------
def group_pw_ref(z, x, w1, b1, w2, b2):
    B, C, Hz, Wz = z.shape
    _, _, Hx, Wx = x.shape
    z2 = jnp.transpose(z.reshape(B, C, Hz * Wz), (0, 2, 1))
    x2 = x.reshape(B, C, Hx * Wx)
    corr = jnp.einsum('bkc,bcl->bkl', z2, x2)                    # (B, Czw, L)
    pool = corr.mean(axis=-1)                                    # (B, Czw)
    h = jnp.maximum(pool @ w1.T + b1, 0.0)
    a = jax.nn.sigmoid(h @ w2.T + b2)
    return (corr * a[:, :, None]).reshape(B, Hz * Wz, Hx, Wx)


if __name__ == "__main__":
    key = jax.random.PRNGKey(0)
    k_z, k_x, k_w1, k_b1, k_w2, k_b2 = jax.random.split(key, 6)

    # Small shapes consistent with the module:
    #   z (template): (B=2, C=16, 4, 4) -> correlation channels = 4*4 = 16
    #   x (search)  : (B=2, C=16, 8, 8)
    #   GroupPW(num_channel=16)  (num_channel must equal Hz*Wz)
    B, C, Hz, Wz, Hx, Wx = 2, 16, 4, 4, 8, 8
    num_channel = Hz * Wz  # 16

    z = jax.random.normal(k_z, (B, C, Hz, Wz), dtype=jnp.float32)
    x = jax.random.normal(k_x, (B, C, Hx, Wx), dtype=jnp.float32)

    # CAModule parameters (reduction=1): two 1x1 convs, C<->C, with bias.
    w1 = 0.1 * jax.random.normal(k_w1, (num_channel, num_channel), dtype=jnp.float32)
    b1 = 0.1 * jax.random.normal(k_b1, (num_channel,), dtype=jnp.float32)
    w2 = 0.1 * jax.random.normal(k_w2, (num_channel, num_channel), dtype=jnp.float32)
    b2 = 0.1 * jax.random.normal(k_b2, (num_channel,), dtype=jnp.float32)

    ref = group_pw_ref(z, x, w1, b1, w2, b2)

    # Exact f32 path.
    out = jax.block_until_ready(group_pw(z, x, w1, b1, w2, b2))
    assert out.shape == (B, num_channel, Hx, Wx)
    assert jnp.allclose(out, ref, atol=1e-4, rtol=1e-4), "f32 mismatch vs reference"

    # bf16-operand correlation matmul (MXU-native on v6e/v7x); relaxed tolerance.
    out_bf16 = jax.block_until_ready(
        group_pw(z, x, w1, b1, w2, b2, compute_dtype=jnp.bfloat16))
    assert jnp.allclose(out_bf16, ref, atol=5e-2, rtol=5e-2), "bf16 mismatch vs reference"

    print("KERNEL_OK")
</pallas_src>

<mosaic_0001>
module attributes {stable_mosaic.version = 11 : i64} {
  func.func @kernel(%arg0: i32, %arg1: memref<2x16x16xf32, #tpu.memory_space<vmem>>, %arg2: memref<2x16x64xf32, #tpu.memory_space<vmem>>, %arg3: memref<16x16xf32, #tpu.memory_space<vmem>>, %arg4: memref<1x16xf32, #tpu.memory_space<vmem>>, %arg5: memref<16x16xf32, #tpu.memory_space<vmem>>, %arg6: memref<1x16xf32, #tpu.memory_space<vmem>>, %arg7: memref<2x16x64xf32, #tpu.memory_space<vmem>>) attributes {dimension_semantics = [#tpu.dimension_semantics<parallel>], iteration_bounds = array<i64: 1>, scalar_prefetch = 0 : i64, scratch_operands = 0 : i64, tpu.core_type = #tpu.core_type<tc>, window_params = [{transform_indices = @transform_0, window_bounds = array<i64: 2, 16, 16>}, {transform_indices = @transform_1, window_bounds = array<i64: 2, 16, 64>}, {pipeline_mode = #tpu.pipeline_mode<synchronous>, transform_indices = @transform_2, window_bounds = array<i64: 16, 16>}, {pipeline_mode = #tpu.pipeline_mode<synchronous>, transform_indices = @transform_3, window_bounds = array<i64: 1, 16>}, {pipeline_mode = #tpu.pipeline_mode<synchronous>, transform_indices = @transform_4, window_bounds = array<i64: 16, 16>}, {pipeline_mode = #tpu.pipeline_mode<synchronous>, transform_indices = @transform_5, window_bounds = array<i64: 1, 16>}, {transform_indices = @transform_6, window_bounds = array<i64: 2, 16, 64>}]} {
    %c0 = arith.constant 0 : index
    %c0_0 = arith.constant 0 : index
    %c0_1 = arith.constant 0 : index
    %0 = vector.load %arg1[%c0, %c0_0, %c0_1] : memref<2x16x16xf32, #tpu.memory_space<vmem>>, vector<2x16x16xf32>
    %c0_2 = arith.constant 0 : index
    %c0_3 = arith.constant 0 : index
    %c0_4 = arith.constant 0 : index
    %1 = vector.load %arg2[%c0_2, %c0_3, %c0_4] : memref<2x16x64xf32, #tpu.memory_space<vmem>>, vector<2x16x64xf32>
    "tpu.trace_start"() <{level = 10 : i32, message = "bck,bcl->bkl"}> : () -> ()
    %cst = arith.constant dense<0.000000e+00> : vector<2x16x64xf32>
    %2 = tpu.matmul %0, %1, %cst {dimension_numbers = #tpu.dot_dimension_numbers<[1], [1], [2], [2], [0, 0, 0, 2, 1, 2], [0], [0]>} : vector<2x16x16xf32>, vector<2x16x64xf32>, vector<2x16x64xf32> -> vector<2x16x64xf32>
    "tpu.trace_stop"() : () -> ()
    %cst_5 = arith.constant dense<0.000000e+00> : vector<2x16xf32>
    %3 = vector.multi_reduction <add>, %2, %cst_5 [2] : vector<2x16x64xf32> to vector<2x16xf32>
    %cst_6 = arith.constant 6.400000e+01 : f32
    %4 = vector.broadcast %cst_6 : f32 to vector<2x16xf32>
    %5 = arith.divf %3, %4 : vector<2x16xf32>
    %c0_7 = arith.constant 0 : index
    %c0_8 = arith.constant 0 : index
    %6 = vector.load %arg3[%c0_7, %c0_8] : memref<16x16xf32, #tpu.memory_space<vmem>>, vector<16x16xf32>
    %cst_9 = arith.constant dense<0.000000e+00> : vector<2x16xf32>
    %7 = tpu.matmul %5, %6, %cst_9 {dimension_numbers = #tpu.dot_dimension_numbers<[1], [0], [0], [1], [0, 0, 1, 1], [], []>} : vector<2x16xf32>, vector<16x16xf32>, vector<2x16xf32> -> vector<2x16xf32>
    %c0_10 = arith.constant 0 : index
    %c0_11 = arith.constant 0 : index
    %8 = vector.load %arg4[%c0_10, %c0_11] : memref<1x16xf32, #tpu.memory_space<vmem>>, vector<1x16xf32>
    %9 = vector.broadcast %8 : vector<1x16xf32> to vector<2x16xf32>
    %10 = arith.addf %7, %9 : vector<2x16xf32>
    %cst_12 = arith.constant 0.000000e+00 : f32
    %11 = vector.broadcast %cst_12 : f32 to vector<2x16xf32>
    %12 = arith.maximumf %10, %11 : vector<2x16xf32>
    %c0_13 = arith.constant 0 : index
    %c0_14 = arith.constant 0 : index
    %13 = vector.load %arg5[%c0_13, %c0_14] : memref<16x16xf32, #tpu.memory_space<vmem>>, vector<16x16xf32>
    %cst_15 = arith.constant dense<0.000000e+00> : vector<2x16xf32>
    %14 = tpu.matmul %12, %13, %cst_15 {dimension_numbers = #tpu.dot_dimension_numbers<[1], [0], [0], [1], [0, 0, 1, 1], [], []>} : vector<2x16xf32>, vector<16x16xf32>, vector<2x16xf32> -> vector<2x16xf32>
    %c0_16 = arith.constant 0 : index
    %c0_17 = arith.constant 0 : index
    %15 = vector.load %arg6[%c0_16, %c0_17] : memref<1x16xf32, #tpu.memory_space<vmem>>, vector<1x16xf32>
    %16 = vector.broadcast %15 : vector<1x16xf32> to vector<2x16xf32>
    %17 = arith.addf %14, %16 : vector<2x16xf32>
    %18 = arith.negf %17 : vector<2x16xf32>
    %19 = math.exp %18 : vector<2x16xf32>
    %cst_18 = arith.constant 1.000000e+00 : f32
    %20 = vector.broadcast %cst_18 : f32 to vector<2x16xf32>
    %21 = arith.addf %20, %19 : vector<2x16xf32>
    %22 = arith.divf %20, %21 : vector<2x16xf32>
    %23 = vector.shape_cast %22 : vector<2x16xf32> to vector<2x16x1xf32>
    %24 = vector.broadcast %23 : vector<2x16x1xf32> to vector<2x16x64xf32>
    %25 = arith.mulf %2, %24 : vector<2x16x64xf32>
    %c0_19 = arith.constant 0 : index
    %c0_20 = arith.constant 0 : index
    %c0_21 = arith.constant 0 : index
    %26 = vector.load %arg7[%c0_19, %c0_20, %c0_21] : memref<2x16x64xf32, #tpu.memory_space<vmem>>, vector<2x16x64xf32>
    tpu.vector_store %arg7[%c0_19, %c0_20, %c0_21], %25 {strides = array<i32>} : memref<2x16x64xf32, #tpu.memory_space<vmem>>, vector<2x16x64xf32>,
    return
  }
  func.func @transform_0(%arg0: i32) -> (i32, i32, i32) {
    %c0_i32 = arith.constant 0 : i32
    %c0_i32_0 = arith.constant 0 : i32
    %c0_i32_1 = arith.constant 0 : i32
    return %arg0, %c0_i32, %c0_i32_0 : i32, i32, i32
  }
  func.func @transform_1(%arg0: i32) -> (i32, i32, i32) {
    %c0_i32 = arith.constant 0 : i32
    %c0_i32_0 = arith.constant 0 : i32
    %c0_i32_1 = arith.constant 0 : i32
    return %arg0, %c0_i32, %c0_i32_0 : i32, i32, i32
  }
  func.func @transform_2(%arg0: i32) -> (i32, i32) {
    %c0_i32 = arith.constant 0 : i32
    %c0_i32_0 = arith.constant 0 : i32
    %c0_i32_1 = arith.constant 0 : i32
    return %c0_i32, %c0_i32_0 : i32, i32
  }
  func.func @transform_3(%arg0: i32) -> (i32, i32) {
    %c0_i32 = arith.constant 0 : i32
    %c0_i32_0 = arith.constant 0 : i32
    %c0_i32_1 = arith.constant 0 : i32
    return %c0_i32, %c0_i32_0 : i32, i32
  }
  func.func @transform_4(%arg0: i32) -> (i32, i32) {
    %c0_i32 = arith.constant 0 : i32
    %c0_i32_0 = arith.constant 0 : i32
    %c0_i32_1 = arith.constant 0 : i32
    return %c0_i32, %c0_i32_0 : i32, i32
  }
  func.func @transform_5(%arg0: i32) -> (i32, i32) {
    %c0_i32 = arith.constant 0 : i32
    %c0_i32_0 = arith.constant 0 : i32
    %c0_i32_1 = arith.constant 0 : i32
    return %c0_i32, %c0_i32_0 : i32, i32
  }
  func.func @transform_6(%arg0: i32) -> (i32, i32, i32) {
    %c0_i32 = arith.constant 0 : i32
    %c0_i32_0 = arith.constant 0 : i32
    %c0_i32_1 = arith.constant 0 : i32
    return %arg0, %c0_i32, %c0_i32_0 : i32, i32, i32
  }
}

</mosaic_0001>

<llo_original>
// kernel: tpu_custom_call.1
$region0: #{tpu_custom_call.1}
  #allocation0 [shape = 'u32[]', space=smem, size = 0x4, offset = 0x4, fixed_abs, tag = 'smem constant byte address 0x4 - core index']
  #allocation1 [shape = 'u32[144,128]{1,0:T(1,128)}', space=vmem, size = 0x12000, scoped, tag = 'internal scratch']
  %s0 = inlined_call_operand.hbm [shape: f32[2,16,16], index: 0, kind: input, shape index: {}]
  %s1 = inlined_call_operand.hbm [shape: f32[2,16,64], index: 1, kind: input, shape index: {}]
  %s2 = inlined_call_operand.hbm [shape: f32[16,16], index: 2, kind: input, shape index: {}]
  %s3 = inlined_call_operand.vmem [shape: f32[1,16], index: 3, kind: input, shape index: {}]
  %s4 = inlined_call_operand.hbm [shape: f32[16,16], index: 4, kind: input, shape index: {}]
  %s5 = inlined_call_operand.vmem [shape: f32[1,16], index: 5, kind: input, shape index: {}]
  %s6 = inlined_call_operand.hbm [shape: f32[2,16,64], index: 6, kind: output, shape index: {}]
  %s7 = sld [smem:[#allocation0]]
  $region50: #{tpu_custom_call.1} parent=0
    _
  %s9 = ssub.s32 1, %s7
  %s10 = scalar_select 0, %s9, %s7
  $region1: #{tpu_custom_call.1} parent=0
    #allocation2 [shape = 'u8[16384]{0}', space=vmem, size = 0x4000, scoped, tag = 'input window, operand 0, single buffered']
    #allocation3 [shape = 's32[1]{0}', space=sflag, size = 0x4, scoped, tag = 'scoped memory for tpu_custom_call.1']
    #allocation4 [shape = 's32[1]{0}', space=sflag, size = 0x4, scoped, tag = 'scoped memory for tpu_custom_call.1']
    #allocation5 [shape = 'u8[16384]{0}', space=vmem, size = 0x4000, scoped, tag = 'input window, operand 1, single buffered']
    #allocation6 [shape = 's32[1]{0}', space=sflag, size = 0x4, scoped, tag = 'scoped memory for tpu_custom_call.1']
    #allocation7 [shape = 'u8[8192]{0}', space=vmem, size = 0x2000, scoped, tag = 'input window, operand 2, single buffered']
    #allocation8 [shape = 'u8[8192]{0}', space=vmem, size = 0x2000, scoped, tag = 'input window, operand 4, single buffered']
    #allocation9 [shape = 's32[1]{0}', space=sflag, size = 0x4, scoped, tag = 'scoped memory for tpu_custom_call.1']
    #allocation10 [shape = 'u8[16384]{0}', space=vmem, size = 0x4000, scoped, tag = 'output window, operand 0, single buffered']
    %11 = vsyncpa [#allocation3], 0
    %12 = vsyncpa [#allocation6], 0
    %13 = vsyncpa [#allocation9], 0
    %14 = vsyncpa [#allocation4], 0
    // Predicated region
    $region2: #{tpu_custom_call.1} parent=1 // pred_check
      _
    $region3: #{tpu_custom_call.1} parent=1 // pred_check_branch
      %16 = sbr.rel (0) target = $region5
    $region4: #{tpu_custom_call.1} parent=1 // pred_region
      %s18 = ssub.s32 512, 512
      %19 = vsyncadd [#allocation3], %s18
      %s20 = sshll.u32 [#allocation2], 4
      %s21 = int_to_ptr.vmem [resolvable:$true] %s20
      %26 = dma.hbm_to_vmem [thread:$0]  %s0, 512, %s21, [#allocation3], 128, 128, 8
    $region5: #{tpu_custom_call.1} parent=1 // pred_fallthru
      _
    // Predicated region
    $region6: #{tpu_custom_call.1} parent=1 // pred_check
      _
    $region7: #{tpu_custom_call.1} parent=1 // pred_check_branch
      %28 = sbr.rel (0) target = $region9
    $region8: #{tpu_custom_call.1} parent=1 // pred_region
      %s30 = ssub.s32 512, 512
      %31 = vsyncadd [#allocation6], %s30
      %s32 = sshll.u32 [#allocation5], 4
      %s33 = int_to_ptr.vmem [resolvable:$true] %s32
      %38 = dma.hbm_to_vmem [thread:$0]  %s1, 512, %s33, [#allocation6], 128, 128, 8
    $region9: #{tpu_custom_call.1} parent=1 // pred_fallthru
      _
    // Predicated region
    $region10: #{tpu_custom_call.1} parent=1 // pred_check
      _
    $region11: #{tpu_custom_call.1} parent=1 // pred_check_branch
      %40 = sbr.rel (0) target = $region13
    $region12: #{tpu_custom_call.1} parent=1 // pred_region
      %s42 = ssub.s32 256, 256
      %43 = vsyncadd [#allocation6], %s42
      %s44 = sshll.u32 [#allocation7], 4
      %s45 = int_to_ptr.vmem [resolvable:$true] %s44
      %50 = dma.hbm_to_vmem [thread:$0]  %s2, 256, %s45, [#allocation6], 128, 128, 8
    $region13: #{tpu_custom_call.1} parent=1 // pred_fallthru
      _
    // Predicated region
    $region14: #{tpu_custom_call.1} parent=1 // pred_check
      _
    $region15: #{tpu_custom_call.1} parent=1 // pred_check_branch
      %52 = sbr.rel (0) target = $region17
    $region16: #{tpu_custom_call.1} parent=1 // pred_region
      _
    $region17: #{tpu_custom_call.1} parent=1 // pred_fallthru
      _
    // Predicated region
    $region18: #{tpu_custom_call.1} parent=1 // pred_check
      _
    $region19: #{tpu_custom_call.1} parent=1 // pred_check_branch
      %54 = sbr.rel (0) target = $region21
    $region20: #{tpu_custom_call.1} parent=1 // pred_region
      %s56 = ssub.s32 256, 256
      %57 = vsyncadd [#allocation9], %s56
      %s58 = sshll.u32 [#allocation8], 4
      %s59 = int_to_ptr.vmem [resolvable:$true] %s58
      %64 = dma.hbm_to_vmem [thread:$0]  %s4, 256, %s59, [#allocation9], 128, 128, 8
    $region21: #{tpu_custom_call.1} parent=1 // pred_fallthru
      _
    // Predicated region
    $region22: #{tpu_custom_call.1} parent=1 // pred_check
      _
    $region23: #{tpu_custom_call.1} parent=1 // pred_check_branch
      %66 = sbr.rel (0) target = $region25
    $region24: #{tpu_custom_call.1} parent=1 // pred_region
      _
    $region25: #{tpu_custom_call.1} parent=1 // pred_fallthru
      _
    // Predicated region
    $region26: #{tpu_custom_call.1} parent=1 // pred_check
      _
    $region27: #{tpu_custom_call.1} parent=1 // pred_check_branch
      %68 = sbr.rel (0) target = $region29
    $region28: #{tpu_custom_call.1} parent=1 // pred_region
      %69 = dma.done [#allocation3], 512
    $region29: #{tpu_custom_call.1} parent=1 // pred_fallthru
      _
    // Predicated region
    $region30: #{tpu_custom_call.1} parent=1 // pred_check
      _
    $region31: #{tpu_custom_call.1} parent=1 // pred_check_branch
      %71 = sbr.rel (0) target = $region33
    $region32: #{tpu_custom_call.1} parent=1 // pred_region
      %72 = dma.done [#allocation6], 512
    $region33: #{tpu_custom_call.1} parent=1 // pred_fallthru
      _
    // Predicated region
    $region34: #{tpu_custom_call.1} parent=1 // pred_check
      _
    $region35: #{tpu_custom_call.1} parent=1 // pred_check_branch
      %74 = sbr.rel (0) target = $region37
    $region36: #{tpu_custom_call.1} parent=1 // pred_region
      %75 = dma.done [#allocation6], 256
    $region37: #{tpu_custom_call.1} parent=1 // pred_fallthru
      _
    // Predicated region
    $region38: #{tpu_custom_call.1} parent=1 // pred_check
      _
    $region39: #{tpu_custom_call.1} parent=1 // pred_check_branch
      %77 = sbr.rel (0) target = $region41
    $region40: #{tpu_custom_call.1} parent=1 // pred_region
      %78 = dma.done [#allocation9], 256
    $region41: #{tpu_custom_call.1} parent=1 // pred_fallthru
      _
    %v79 = vld [vmem:[#allocation2] sm:$0xff]
    %v80 = vld [vmem:[#allocation2 + $0x8] sm:$0xff]
    %v81 = vld [vmem:[#allocation2 + $0x10] sm:$0xff]
    %v82 = vld [vmem:[#allocation2 + $0x18] sm:$0xff]
    %v83 = vld [vmem:[#allocation5] sm:$0xff]
    %v84 = vld [vmem:[#allocation5 + $0x8] sm:$0xff]
    %v85 = vld [vmem:[#allocation5 + $0x10] sm:$0xff]
    %v86 = vld [vmem:[#allocation5 + $0x18] sm:$0xff]
    %87 = vxpose.xlu0.b32.start [1/16] %v79, 128
    %88 = vxpose.xlu0.b32.cont [2/16] %v80, 128
    %89 = vxpose.xlu0.b32.cont [3/16] 0.0, 128
    %90 = vxpose.xlu0.b32.cont [4/16] 0.0, 128
    %91 = vxpose.xlu0.b32.cont [5/16] 0.0, 128
    %92 = vxpose.xlu0.b32.cont [6/16] 0.0, 128
    %93 = vxpose.xlu0.b32.cont [7/16] 0.0, 128
    %94 = vxpose.xlu0.b32.cont [8/16] 0.0, 128
    %95 = vxpose.xlu0.b32.cont [9/16] 0.0, 128
    %96 = vxpose.xlu0.b32.cont [10/16] 0.0, 128
    %97 = vxpose.xlu0.b32.cont [11/16] 0.0, 128
    %98 = vxpose.xlu0.b32.cont [12/16] 0.0, 128
    %99 = vxpose.xlu0.b32.cont [13/16] 0.0, 128
    %100 = vxpose.xlu0.b32.cont [14/16] 0.0, 128
    %101 = vxpose.xlu0.b32.cont [15/16] 0.0, 128
    %102 = vxpose.xlu0.b32.end [16/16] 0.0, 128
    %v103 = vpop.trf.xlu0
    %v104 = vpop.trf.xlu0
    %v105 = vpop.trf.xlu0
    %v106 = vpop.trf.xlu0
    %v107 = vpop.trf.xlu0
    %v108 = vpop.trf.xlu0
    %v109 = vpop.trf.xlu0
    %v110 = vpop.trf.xlu0
    %v111 = vpop.trf.xlu0
    %v112 = vpop.trf.xlu0
    %v113 = vpop.trf.xlu0
    %v114 = vpop.trf.xlu0
    %v115 = vpop.trf.xlu0
    %v116 = vpop.trf.xlu0
    %v117 = vpop.trf.xlu0
    %v118 = vpop.trf.xlu0
    %vm119 = vcmask 130048
    %v121 = vsel %vm119, %v103, 0
    %v124 = vsel %vm119, %v104, 0
    %126 = vmatprep.subr.mxu0 0.0
    %127 = vmatpush1.msra.mxu0 %v83
    %128 = vmatprep.subr.mxu0 0.0
    %129 = vmatpush1.msra.mxu0 %v84
    %130 = vmatprep.subr.mxu0 0.0
    %131 = vmatpush1.msra.mxu0 0.0
    %132 = vmatprep.subr.mxu0 0.0
    %133 = vmatpush1.msra.mxu0 0.0
    %134 = vmatprep.subr.mxu0 0.0
    %135 = vmatpush1.msra.mxu0 0.0
    %136 = vmatprep.subr.mxu0 0.0
    %137 = vmatpush1.msra.mxu0 0.0
    %138 = vmatprep.subr.mxu0 0.0
    %139 = vmatpush1.msra.mxu0 0.0
    %140 = vmatprep.subr.mxu0 0.0
    %141 = vmatpush1.msra.mxu0 0.0
    %142 = vmatprep.subr.mxu0 0.0
    %143 = vmatpush1.msra.mxu0 0.0
    %144 = vmatprep.subr.mxu0 0.0
    %145 = vmatpush1.msra.mxu0 0.0
    %146 = vmatprep.subr.mxu0 0.0
    %147 = vmatpush1.msra.mxu0 0.0
    %148 = vmatprep.subr.mxu0 0.0
    %149 = vmatpush1.msra.mxu0 0.0
    %150 = vmatprep.subr.mxu0 0.0
    %151 = vmatpush1.msra.mxu0 0.0
    %152 = vmatprep.subr.mxu0 0.0
    %153 = vmatpush1.msra.mxu0 0.0
    %154 = vmatprep.subr.mxu0 0.0
    %155 = vmatpush1.msra.mxu0 0.0
    %156 = vmatprep.subr.mxu0 0.0
    %157 = vmatpush1.msra.mxu0 0.0
    %158 = vmatprep.subr.mxu0 0.0
    %159 = vmatpush1.msra.mxu0 0.0
    %160 = vmatprep.subr.mxu0 0.0
    %161 = vmatpush1.msra.mxu0 0.0
    %162 = vmatprep.subr.mxu0 0.0
    %163 = vmatpush1.msra.mxu0 0.0
    %164 = vmatprep.subr.mxu0 0.0
    %165 = vmatpush1.msra.mxu0 0.0
    %166 = vmatprep.subr.mxu0 0.0
    %167 = vmatpush1.msra.mxu0 0.0
    %168 = vmatprep.subr.mxu0 0.0
    %169 = vmatpush1.msra.mxu0 0.0
    %170 = vmatprep.subr.mxu0 0.0
    %171 = vmatpush1.msra.mxu0 0.0
    %172 = vmatprep.subr.mxu0 0.0
    %173 = vmatpush1.msra.mxu0 0.0
    %174 = vmatprep.subr.mxu0 0.0
    %175 = vmatpush1.msra.mxu0 0.0
    %176 = vmatprep.subr.mxu0 0.0
    %177 = vmatpush1.msra.mxu0 0.0
    %178 = vmatprep.subr.mxu0 0.0
    %179 = vmatpush1.msra.mxu0 0.0
    %180 = vmatprep.subr.mxu0 0.0
    %181 = vmatpush1.msra.mxu0 0.0
    %182 = vmatprep.subr.mxu0 0.0
    %183 = vmatpush1.msra.mxu0 0.0
    %184 = vmatprep.subr.mxu0 0.0
    %185 = vmatpush1.msra.mxu0 0.0
    %186 = vmatprep.subr.mxu0 0.0
    %187 = vmatpush1.msra.mxu0 0.0
    %188 = vmatprep.subr.mxu0 0.0
    %189 = vmatpush1.msra.mxu0 0.0
    %190 = vmatprep.mubr.f32.mxu0 0.0
    %191 = vmatmul.mubr.f32.gmra.mrb[0].mxu0 %v121
    %v192 = vpop.f32.mrb[0].mxu0
    %v193 = vadd.f32 0.0, %v192
    %v194 = vpop.f32.mrb[0].mxu0
    %195 = vmatprep.mubr.f32.mxu0 0.0
    %196 = vmatmul.mubr.f32.gmra.mrb[0].mxu0 %v124
    %v197 = vpop.f32.mrb[0].mxu0
    %v198 = vadd.f32 0.0, %v197
    %v199 = vpop.f32.mrb[0].mxu0
    %200 = vdwg.mxu0
    %201 = vxpose.xlu0.b32.start [1/16] %v81, 128
    %202 = vxpose.xlu0.b32.cont [2/16] %v82, 128
    %203 = vxpose.xlu0.b32.cont [3/16] 0.0, 128
    %204 = vxpose.xlu0.b32.cont [4/16] 0.0, 128
    %205 = vxpose.xlu0.b32.cont [5/16] 0.0, 128
    %206 = vxpose.xlu0.b32.cont [6/16] 0.0, 128
    %207 = vxpose.xlu0.b32.cont [7/16] 0.0, 128
    %208 = vxpose.xlu0.b32.cont [8/16] 0.0, 128
    %209 = vxpose.xlu0.b32.cont [9/16] 0.0, 128
    %210 = vxpose.xlu0.b32.cont [10/16] 0.0, 128
    %211 = vxpose.xlu0.b32.cont [11/16] 0.0, 128
    %212 = vxpose.xlu0.b32.cont [12/16] 0.0, 128
    %213 = vxpose.xlu0.b32.cont [13/16] 0.0, 128
    %214 = vxpose.xlu0.b32.cont [14/16] 0.0, 128
    %215 = vxpose.xlu0.b32.cont [15/16] 0.0, 128
    %216 = vxpose.xlu0.b32.end [16/16] 0.0, 128
    %v217 = vpop.trf.xlu0
    %v218 = vpop.trf.xlu0
    %v219 = vpop.trf.xlu0
    %v220 = vpop.trf.xlu0
    %v221 = vpop.trf.xlu0
    %v222 = vpop.trf.xlu0
    %v223 = vpop.trf.xlu0
    %v224 = vpop.trf.xlu0
    %v225 = vpop.trf.xlu0
    %v226 = vpop.trf.xlu0
    %v227 = vpop.trf.xlu0
    %v228 = vpop.trf.xlu0
    %v229 = vpop.trf.xlu0
    %v230 = vpop.trf.xlu0
    %v231 = vpop.trf.xlu0
    %v232 = vpop.trf.xlu0
    %v234 = vsel %vm119, %v217, 0
    %v237 = vsel %vm119, %v218, 0
    %239 = vmatprep.subr.mxu0 0.0
    %240 = vmatpush1.msra.mxu0 %v85
    %241 = vmatprep.subr.mxu0 0.0
    %242 = vmatpush1.msra.mxu0 %v86
    %243 = vmatprep.subr.mxu0 0.0
    %244 = vmatpush1.msra.mxu0 0.0
    %245 = vmatprep.subr.mxu0 0.0
    %246 = vmatpush1.msra.mxu0 0.0
    %247 = vmatprep.subr.mxu0 0.0
    %248 = vmatpush1.msra.mxu0 0.0
    %249 = vmatprep.subr.mxu0 0.0
    %250 = vmatpush1.msra.mxu0 0.0
    %251 = vmatprep.subr.mxu0 0.0
    %252 = vmatpush1.msra.mxu0 0.0
    %253 = vmatprep.subr.mxu0 0.0
    %254 = vmatpush1.msra.mxu0 0.0
    %255 = vmatprep.subr.mxu0 0.0
    %256 = vmatpush1.msra.mxu0 0.0
    %257 = vmatprep.subr.mxu0 0.0
    %258 = vmatpush1.msra.mxu0 0.0
    %259 = vmatprep.subr.mxu0 0.0
    %260 = vmatpush1.msra.mxu0 0.0
    %261 = vmatprep.subr.mxu0 0.0
    %262 = vmatpush1.msra.mxu0 0.0
    %263 = vmatprep.subr.mxu0 0.0
    %264 = vmatpush1.msra.mxu0 0.0
    %265 = vmatprep.subr.mxu0 0.0
    %266 = vmatpush1.msra.mxu0 0.0
    %267 = vmatprep.subr.mxu0 0.0
    %268 = vmatpush1.msra.mxu0 0.0
    %269 = vmatprep.subr.mxu0 0.0
    %270 = vmatpush1.msra.mxu0 0.0
    %271 = vmatprep.subr.mxu0 0.0
    %272 = vmatpush1.msra.mxu0 0.0
    %273 = vmatprep.subr.mxu0 0.0
    %274 = vmatpush1.msra.mxu0 0.0
    %275 = vmatprep.subr.mxu0 0.0
    %276 = vmatpush1.msra.mxu0 0.0
    %277 = vmatprep.subr.mxu0 0.0
    %278 = vmatpush1.msra.mxu0 0.0
    %279 = vmatprep.subr.mxu0 0.0
    %280 = vmatpush1.msra.mxu0 0.0
    %281 = vmatprep.subr.mxu0 0.0
    %282 = vmatpush1.msra.mxu0 0.0
    %283 = vmatprep.subr.mxu0 0.0
    %284 = vmatpush1.msra.mxu0 0.0
    %285 = vmatprep.subr.mxu0 0.0
    %286 = vmatpush1.msra.mxu0 0.0
    %287 = vmatprep.subr.mxu0 0.0
    %288 = vmatpush1.msra.mxu0 0.0
    %289 = vmatprep.subr.mxu0 0.0
    %290 = vmatpush1.msra.mxu0 0.0
    %291 = vmatprep.subr.mxu0 0.0
    %292 = vmatpush1.msra.mxu0 0.0
    %293 = vmatprep.subr.mxu0 0.0
    %294 = vmatpush1.msra.mxu0 0.0
    %295 = vmatprep.subr.mxu0 0.0
    %296 = vmatpush1.msra.mxu0 0.0
    %297 = vmatprep.subr.mxu0 0.0
    %298 = vmatpush1.msra.mxu0 0.0
    %299 = vmatprep.subr.mxu0 0.0
    %300 = vmatpush1.msra.mxu0 0.0
    %301 = vmatprep.subr.mxu0 0.0
    %302 = vmatpush1.msra.mxu0 0.0
    %303 = vmatprep.mubr.f32.mxu0 0.0
    %304 = vmatmul.mubr.f32.gmra.mrb[0].mxu0 %v234
    %v305 = vpop.f32.mrb[0].mxu0
    %v306 = vadd.f32 0.0, %v305
    %v307 = vpop.f32.mrb[0].mxu0
    %308 = vmatprep.mubr.f32.mxu0 0.0
    %309 = vmatmul.mubr.f32.gmra.mrb[0].mxu0 %v237
    %v310 = vpop.f32.mrb[0].mxu0
    %v311 = vadd.f32 0.0, %v310
    %v312 = vpop.f32.mrb[0].mxu0
    %313 = vdwg.mxu0
    %vm314 = vcmask 523264
    %v315 = vsel %vm314, %v193, 0.0
    %316 = vadd.xlane.f32.xlu0 %v315
    %v317 = vpop.xlane.xlu0 %316
    %v318 = vsel %vm314, %v198, 0.0
    %319 = vadd.xlane.f32.xlu0 %v318
    %v320 = vpop.xlane.xlu0 %319
    %v321 = vsel %vm314, %v306, 0.0
    %322 = vadd.xlane.f32.xlu0 %v321
    %v323 = vpop.xlane.xlu0 %322
    %v324 = vsel %vm314, %v311, 0.0
    %325 = vadd.xlane.f32.xlu0 %v324
    %v326 = vpop.xlane.xlu0 %325
    %v327 = vrcp.pop 64.0
    %v328 = vmul.f32 %v317, %v327
    %v329 = vmul.f32 %v320, %v327
    %v330 = vmul.f32 %v323, %v327
    %v331 = vmul.f32 %v326, %v327
    %v332 = vld [vmem:[#allocation7] sm:$0xff]
    %v333 = vld [vmem:[#allocation7 + $0x8] sm:$0xff]
    %v334 = vld [vmem:[%s3] sm:$0x1]
    %v336 = vlaneseq
    %v337 = vshrl.u32 %v336, 7
    %v338 = vsub.s32 0, %v337
    %v339 = vrot.slane %v334, %v338
    %v345 = vlaneseq
    %v346 = vand.u32 %v345, 127
    %v347 = vlaneseq
    %v348 = vshrl.u32 %v347, 7
    %v349 = vsub.s32 %v346, %v348
    %v350 = vrot.slane %v328, %v349
    %v351 = vadd.s32 %v346, 4294967288
    %v352 = vlaneseq
    %v353 = vshrl.u32 %v352, 7
    %v354 = vsub.s32 %v351, %v353
    %v355 = vrot.slane %v329, %v354
    %vm356 = vcmask 130112
    %v357 = vsel %vm356, %v355, %v350
    %v358 = vlaneseq
    %v359 = vshrl.u32 %v358, 7
    %v360 = vsub.s32 %v346, %v359
    %v361 = vrot.slane %v330, %v360
    %v362 = vlaneseq
    %v363 = vshrl.u32 %v362, 7
    %v364 = vsub.s32 %v351, %v363
    %v365 = vrot.slane %v331, %v364
    %v366 = vsel %vm356, %v365, %v361
    %vm367 = vcmask 1041409
    %v368 = vsel %vm367, %v366, %v357
    %v369 = vsel %vm119, %v368, 0
    %371 = vmatprep.subr.mxu0 0.0
    %372 = vmatpush1.msra.mxu0 %v332
    %373 = vmatprep.subr.mxu0 0.0
    %374 = vmatpush1.msra.mxu0 %v333
    %375 = vmatprep.subr.mxu0 0.0
    %376 = vmatpush1.msra.mxu0 0.0
    %377 = vmatprep.subr.mxu0 0.0
    %378 = vmatpush1.msra.mxu0 0.0
    %379 = vmatprep.subr.mxu0 0.0
    %380 = vmatpush1.msra.mxu0 0.0
    %381 = vmatprep.subr.mxu0 0.0
    %382 = vmatpush1.msra.mxu0 0.0
    %383 = vmatprep.subr.mxu0 0.0
    %384 = vmatpush1.msra.mxu0 0.0
    %385 = vmatprep.subr.mxu0 0.0
    %386 = vmatpush1.msra.mxu0 0.0
    %387 = vmatprep.subr.mxu0 0.0
    %388 = vmatpush1.msra.mxu0 0.0
    %389 = vmatprep.subr.mxu0 0.0
    %390 = vmatpush1.msra.mxu0 0.0
    %391 = vmatprep.subr.mxu0 0.0
    %392 = vmatpush1.msra.mxu0 0.0
    %393 = vmatprep.subr.mxu0 0.0
    %394 = vmatpush1.msra.mxu0 0.0
    %395 = vmatprep.subr.mxu0 0.0
    %396 = vmatpush1.msra.mxu0 0.0
    %397 = vmatprep.subr.mxu0 0.0
    %398 = vmatpush1.msra.mxu0 0.0
    %399 = vmatprep.subr.mxu0 0.0
    %400 = vmatpush1.msra.mxu0 0.0
    %401 = vmatprep.subr.mxu0 0.0
    %402 = vmatpush1.msra.mxu0 0.0
    %403 = vmatprep.subr.mxu0 0.0
    %404 = vmatpush1.msra.mxu0 0.0
    %405 = vmatprep.subr.mxu0 0.0
    %406 = vmatpush1.msra.mxu0 0.0
    %407 = vmatprep.subr.mxu0 0.0
    %408 = vmatpush1.msra.mxu0 0.0
    %409 = vmatprep.subr.mxu0 0.0
    %410 = vmatpush1.msra.mxu0 0.0
    %411 = vmatprep.subr.mxu0 0.0
    %412 = vmatpush1.msra.mxu0 0.0
    %413 = vmatprep.subr.mxu0 0.0
    %414 = vmatpush1.msra.mxu0 0.0
    %415 = vmatprep.subr.mxu0 0.0
    %416 = vmatpush1.msra.mxu0 0.0
    %417 = vmatprep.subr.mxu0 0.0
    %418 = vmatpush1.msra.mxu0 0.0
    %419 = vmatprep.subr.mxu0 0.0
    %420 = vmatpush1.msra.mxu0 0.0
    %421 = vmatprep.subr.mxu0 0.0
    %422 = vmatpush1.msra.mxu0 0.0
    %423 = vmatprep.subr.mxu0 0.0
    %424 = vmatpush1.msra.mxu0 0.0
    %425 = vmatprep.subr.mxu0 0.0
    %426 = vmatpush1.msra.mxu0 0.0
    %427 = vmatprep.subr.mxu0 0.0
    %428 = vmatpush1.msra.mxu0 0.0
    %429 = vmatprep.subr.mxu0 0.0
    %430 = vmatpush1.msra.mxu0 0.0
    %431 = vmatprep.subr.mxu0 0.0
    %432 = vmatpush1.msra.mxu0 0.0
    %433 = vmatprep.subr.mxu0 0.0
    %434 = vmatpush1.msra.mxu0 0.0
    %435 = vmatprep.mubr.f32.mxu0 0.0
    %436 = vmatmul.mubr.f32.gmra.mrb[0].mxu0 %v369
    %v437 = vpop.f32.mrb[0].mxu0
    %v438 = vadd.f32 %v339, %v437
    %v439 = vpop.f32.mrb[0].mxu0
    %440 = vdwg.mxu0
    %v441 = vmax.f32 %v438, 0.0
    %v442 = vld [vmem:[#allocation8] sm:$0xff]
    %v443 = vld [vmem:[#allocation8 + $0x8] sm:$0xff]
    %v444 = vld [vmem:[%s5] sm:$0x1]
    %v446 = vlaneseq
    %v447 = vshrl.u32 %v446, 7
    %v448 = vsub.s32 0, %v447
    %v449 = vrot.slane %v444, %v448
    %v452 = vsel %vm119, %v441, 0
    %454 = vmatprep.subr.mxu0 0.0
    %455 = vmatpush1.msra.mxu0 %v442
    %456 = vmatprep.subr.mxu0 0.0
    %457 = vmatpush1.msra.mxu0 %v443
    %458 = vmatprep.subr.mxu0 0.0
    %459 = vmatpush1.msra.mxu0 0.0
    %460 = vmatprep.subr.mxu0 0.0
    %461 = vmatpush1.msra.mxu0 0.0
    %462 = vmatprep.subr.mxu0 0.0
    %463 = vmatpush1.msra.mxu0 0.0
    %464 = vmatprep.subr.mxu0 0.0
    %465 = vmatpush1.msra.mxu0 0.0
    %466 = vmatprep.subr.mxu0 0.0
    %467 = vmatpush1.msra.mxu0 0.0
    %468 = vmatprep.subr.mxu0 0.0
    %469 = vmatpush1.msra.mxu0 0.0
    %470 = vmatprep.subr.mxu0 0.0
    %471 = vmatpush1.msra.mxu0 0.0
    %472 = vmatprep.subr.mxu0 0.0
    %473 = vmatpush1.msra.mxu0 0.0
    %474 = vmatprep.subr.mxu0 0.0
    %475 = vmatpush1.msra.mxu0 0.0
    %476 = vmatprep.subr.mxu0 0.0
    %477 = vmatpush1.msra.mxu0 0.0
    %478 = vmatprep.subr.mxu0 0.0
    %479 = vmatpush1.msra.mxu0 0.0
    %480 = vmatprep.subr.mxu0 0.0
    %481 = vmatpush1.msra.mxu0 0.0
    %482 = vmatprep.subr.mxu0 0.0
    %483 = vmatpush1.msra.mxu0 0.0
    %484 = vmatprep.subr.mxu0 0.0
    %485 = vmatpush1.msra.mxu0 0.0
    %486 = vmatprep.subr.mxu0 0.0
    %487 = vmatpush1.msra.mxu0 0.0
    %488 = vmatprep.subr.mxu0 0.0
    %489 = vmatpush1.msra.mxu0 0.0
    %490 = vmatprep.subr.mxu0 0.0
    %491 = vmatpush1.msra.mxu0 0.0
    %492 = vmatprep.subr.mxu0 0.0
    %493 = vmatpush1.msra.mxu0 0.0
    %494 = vmatprep.subr.mxu0 0.0
    %495 = vmatpush1.msra.mxu0 0.0
    %496 = vmatprep.subr.mxu0 0.0
    %497 = vmatpush1.msra.mxu0 0.0
    %498 = vmatprep.subr.mxu0 0.0
    %499 = vmatpush1.msra.mxu0 0.0
    %500 = vmatprep.subr.mxu0 0.0
    %501 = vmatpush1.msra.mxu0 0.0
    %502 = vmatprep.subr.mxu0 0.0
    %503 = vmatpush1.msra.mxu0 0.0
    %504 = vmatprep.subr.mxu0 0.0
    %505 = vmatpush1.msra.mxu0 0.0
    %506 = vmatprep.subr.mxu0 0.0
    %507 = vmatpush1.msra.mxu0 0.0
    %508 = vmatprep.subr.mxu0 0.0
    %509 = vmatpush1.msra.mxu0 0.0
    %510 = vmatprep.subr.mxu0 0.0
    %511 = vmatpush1.msra.mxu0 0.0
    %512 = vmatprep.subr.mxu0 0.0
    %513 = vmatpush1.msra.mxu0 0.0
    %514 = vmatprep.subr.mxu0 0.0
    %515 = vmatpush1.msra.mxu0 0.0
    %516 = vmatprep.subr.mxu0 0.0
    %517 = vmatpush1.msra.mxu0 0.0
    %518 = vmatprep.mubr.f32.mxu0 0.0
    %519 = vmatmul.mubr.f32.gmra.mrb[0].mxu0 %v452
    %v520 = vpop.f32.mrb[0].mxu0
    %v521 = vadd.f32 %v449, %v520
    %v522 = vpop.f32.mrb[0].mxu0
    %523 = vdwg.mxu0
    %v524 = vxor.u32 %v521, 2147483648
    %v525 = vmul.f32 %v524, 1.442695
    %v526 = vpow.pop %v525
    %v527 = vadd.f32 %v526, 1.0
    %v528 = vrcp.pop %v527
    %v529 = vmul.f32 1.0, %v528
    %v530 = vlaneseq
    %v531 = vshrl.u32 %v530, 7
    %v532 = vsub.s32 0, %v531
    %v533 = vrot.slane %v529, %v532
    %535 = vbcast.lane.b32.xlu0 %v533, 256
    %v536 = vpop.permute.xlu0 %535
    %s538 = sor.u32 256, 8
    %539 = vbcast.lane.b32.xlu0 %v533, %s538
    %v540 = vpop.permute.xlu0 %539
    %v541 = vlaneseq
    %v542 = vshrl.u32 %v541, 7
    %v543 = vsub.s32 1, %v542
    %v544 = vrot.slane %v529, %v543
    %546 = vbcast.lane.b32.xlu0 %v544, 256
    %v547 = vpop.permute.xlu0 %546
    %s549 = sor.u32 256, 8
    %550 = vbcast.lane.b32.xlu0 %v544, %s549
    %v551 = vpop.permute.xlu0 %550
    %v552 = vmul.f32 %v193, %v536
    %v553 = vmul.f32 %v198, %v540
    %v554 = vmul.f32 %v306, %v547
    %v555 = vmul.f32 %v311, %v551
    %556 = vst.msk [vmem:[#allocation10] sm:$0xff] %vm314, %v552
    %557 = vst.msk [vmem:[#allocation10 + $0x8] sm:$0xff] %vm314, %v553
    %558 = vst.msk [vmem:[#allocation10 + $0x10] sm:$0xff] %vm314, %v554
    %559 = vst.msk [vmem:[#allocation10 + $0x18] sm:$0xff] %vm314, %v555
    // Predicated region
    $region42: #{tpu_custom_call.1} parent=1 // pred_check
      _
    $region43: #{tpu_custom_call.1} parent=1 // pred_check_branch
      %561 = sbr.rel (0) target = $region45
    $region44: #{tpu_custom_call.1} parent=1 // pred_region
      %s563 = ssub.s32 512, 512
      %564 = vsyncadd [#allocation4], %s563
      %s565 = sshll.u32 [#allocation10], 4
      %s566 = int_to_ptr.vmem [resolvable:$true] %s565
      %571 = dma.vmem_to_hbm [thread:$0]  %s566, 512, %s6, [#allocation4], 128, 128, 8
    $region45: #{tpu_custom_call.1} parent=1 // pred_fallthru
      _
    // Predicated region
    $region46: #{tpu_custom_call.1} parent=1 // pred_check
      _
    $region47: #{tpu_custom_call.1} parent=1 // pred_check_branch
      %573 = sbr.rel (0) target = $region49
    $region48: #{tpu_custom_call.1} parent=1 // pred_region
      %574 = dma.done [#allocation4], 512
    $region49: #{tpu_custom_call.1} parent=1 // pred_fallthru
      _
    %575 = vsyncpa [#allocation3], 1
    %576 = vsyncpa [#allocation6], 1
    %577 = vsyncpa [#allocation9], 1
    %578 = vsyncpa [#allocation4], 1

</llo_original>
